<compile_context>
chip_gen: v7x
topology: tpu7x:2x2x1
jax: 0.10.0
libtpu: 0.0.40
codegen_flags: <defaults>
</compile_context>

<pallas_src>
import functools
import math

import jax
import jax.numpy as jnp
from jax.experimental import pallas as pl
from jax.experimental.pallas import tpu as pltpu


# Total budget (bytes) for the double-buffered pipeline working set
# (val-in + gate-in + out, x2 buffers).  Conservative enough for the default
# scoped VMEM limit on all generations (16 MiB v5e / 32 MiB v6e / 32 MiB v7x).
_VMEM_BUDGET = 8 << 20
_VMEM_HARD_CAP = 12 << 20     # never exceed this for a single block's footprint
_MAX_TM = 2048                # cap rows per tile (keeps per-step latency sane)


def _round_down(x, m):
    return (x // m) * m


def _glu_split_kernel(val_ref, gate_ref, o_ref, *, nonlinear: bool):
    """val/gate arrive as separate, already-split VMEM tiles (same shape as out)."""
    val = val_ref[...]
    gate = gate_ref[...]
    if nonlinear:
        val = jnp.tanh(val)
    o_ref[...] = (val * jax.nn.sigmoid(gate)).astype(o_ref.dtype)


def _glu_fused_kernel(x_ref, o_ref, *, nonlinear: bool):
    """Fallback: one (tm, 2C) tile; halves are read directly from the ref."""
    c = o_ref.shape[-1]
    val = x_ref[:, :c]
    gate = x_ref[:, c:]
    if nonlinear:
        val = jnp.tanh(val)
    o_ref[...] = (val * jax.nn.sigmoid(gate)).astype(o_ref.dtype)


def _pick_tile_m(m, c, itemsize):
    """Largest row tile that keeps the double-buffered working set in budget."""
    if m <= 8:
        return m                                    # full extent: always legal
    bytes_per_row = 2 * 3 * c * itemsize            # (2C in + C out) x 2 buffers
    tm = _VMEM_BUDGET // max(bytes_per_row, 1)
    tm = max(8, min(_MAX_TM, _round_down(tm, 8)))
    if tm >= m:
        # Whole array fits in one tile: still emit >= 2 programs so the
        # "parallel" grid axis can shard across v7x's two TensorCores.
        half = -(-m // 2)
        tm = max(8, ((half + 7) // 8) * 8)
    return tm


def _glu_last_axis(x2d, c, nonlinear):
    """x2d: (M, 2C) with the split on the minor (lane) axis."""
    m, two_c = x2d.shape
    itemsize = jnp.dtype(x2d.dtype).itemsize
    tm = _pick_tile_m(m, c, itemsize)
    grid = (pl.cdiv(m, tm),)
    out_shape = jax.ShapeDtypeStruct((m, c), x2d.dtype)
    out_spec = pl.BlockSpec((tm, c), lambda i: (i, 0))
    params = pltpu.CompilerParams(dimension_semantics=("parallel",))

    if c % 128 == 0:
        # Two lane-aligned blocks over the same array: the split happens on the
        # DMA/addressing path, no in-kernel lane shuffling.
        kernel = functools.partial(_glu_split_kernel, nonlinear=nonlinear)
        return pl.pallas_call(
            kernel,
            out_shape=out_shape,
            grid_spec=pltpu.PrefetchScalarGridSpec(
                num_scalar_prefetch=0,
                grid=grid,
                in_specs=[
                    pl.BlockSpec((tm, c), lambda i: (i, 0)),   # val half
                    pl.BlockSpec((tm, c), lambda i: (i, 1)),   # gate half
                ],
                out_specs=out_spec,
            ),
            compiler_params=params,
        )(x2d, x2d)

    # C not lane-aligned: load the full (tm, 2C) tile and slice from the ref.
    kernel = functools.partial(_glu_fused_kernel, nonlinear=nonlinear)
    return pl.pallas_call(
        kernel,
        out_shape=out_shape,
        grid_spec=pltpu.PrefetchScalarGridSpec(
            num_scalar_prefetch=0,
            grid=grid,
            in_specs=[pl.BlockSpec((tm, two_c), lambda i: (i, 0))],
            out_specs=out_spec,
        ),
        compiler_params=params,
    )(x2d)


def _glu_mid_axis(x3d, c, nonlinear):
    """x3d: (A, 2C, B); split along the middle axis. Returns None if it cannot
    be tiled within the VMEM budget (caller falls back to the transpose path)."""
    a, _, b = x3d.shape
    itemsize = jnp.dtype(x3d.dtype).itemsize

    if b % 128 == 0:
        max_tb = _VMEM_BUDGET // max(2 * 3 * c * itemsize, 1)
        tb = min(b, max(128, _round_down(max_tb, 128)))
    else:
        tb = b                                      # full minor extent: legal

    block_bytes = 2 * 3 * c * tb * itemsize         # per A-row, double-buffered
    if block_bytes > _VMEM_HARD_CAP:
        return None

    ta = max(1, min(a, _VMEM_BUDGET // max(block_bytes, 1), _MAX_TM))
    if ta >= a and a >= 2 and pl.cdiv(b, tb) == 1:
        ta = -(-a // 2)                              # >= 2 programs for megacore

    grid = (pl.cdiv(a, ta), pl.cdiv(b, tb))
    kernel = functools.partial(_glu_split_kernel, nonlinear=nonlinear)
    return pl.pallas_call(
        kernel,
        out_shape=jax.ShapeDtypeStruct((a, c, b), x3d.dtype),
        grid_spec=pltpu.PrefetchScalarGridSpec(
            num_scalar_prefetch=0,
            grid=grid,
            in_specs=[
                pl.BlockSpec((ta, c, tb), lambda i, j: (i, 0, j)),  # val half
                pl.BlockSpec((ta, c, tb), lambda i, j: (i, 1, j)),  # gate half
            ],
            out_specs=pl.BlockSpec((ta, c, tb), lambda i, j: (i, 0, j)),
        ),
        compiler_params=pltpu.CompilerParams(
            dimension_semantics=("parallel", "parallel")),
    )(x3d, x3d)


def gated_linear_unit(x, dim: int = -1, nonlinear: bool = True):
    """JAX/Pallas equivalent of GatedLinearUnit(dim, nonlinear).forward(x)."""
    ndim = x.ndim
    axis = dim % ndim
    two_c = x.shape[axis]
    if two_c % 2 != 0:
        raise ValueError("The specified dimension must be even")
    c = two_c // 2

    if axis == ndim - 1:
        lead = x.shape[:-1]
        m = math.prod(lead) if lead else 1
        out2d = _glu_last_axis(x.reshape(m, two_c), c, nonlinear)
        return out2d.reshape(lead + (c,))

    # Split axis is not minor: contiguous reshape to (A, 2C, B), no transpose.
    a = math.prod(x.shape[:axis]) if axis > 0 else 1
    b = math.prod(x.shape[axis + 1:])
    if c % 8 == 0 and b > 0:
        out3d = _glu_mid_axis(x.reshape(a, two_c, b), c, nonlinear)
        if out3d is not None:
            return out3d.reshape(x.shape[:axis] + (c,) + x.shape[axis + 1:])

    # Rare fallback (tiny/odd channel counts or oversized rows): transpose path.
    # TODO(synk): could fold B into lanes instead of paying the transpose here.
    x_moved = jnp.moveaxis(x, axis, -1)
    lead = x_moved.shape[:-1]
    m = math.prod(lead) if lead else 1
    out2d = _glu_last_axis(x_moved.reshape(m, two_c), c, nonlinear)
    return jnp.moveaxis(out2d.reshape(lead + (c,)), -1, axis)


def _glu_reference(x, dim=-1, nonlinear=True):
    val, gate = jnp.split(x, 2, axis=dim)
    if nonlinear:
        val = jnp.tanh(val)
    return val * jax.nn.sigmoid(gate)


if __name__ == "__main__":
    key = jax.random.PRNGKey(0)
    k1, k2, k3 = jax.random.split(key, 3)

    # 1) dim=-1, C=128: lane-aligned dual-BlockSpec path.
    x1 = jax.random.normal(k1, (2, 8, 256), dtype=jnp.float32)
    out1 = jax.block_until_ready(gated_linear_unit(x1, dim=-1, nonlinear=True))
    ref1 = _glu_reference(x1, dim=-1, nonlinear=True)
    assert out1.shape == (2, 8, 128), out1.shape
    assert jnp.allclose(out1, ref1, atol=1e-5, rtol=1e-5), "mismatch (dim=-1)"

    # 2) nonlinear=False path (no tanh).
    out1b = jax.block_until_ready(gated_linear_unit(x1, dim=-1, nonlinear=False))
    ref1b = _glu_reference(x1, dim=-1, nonlinear=False)
    assert jnp.allclose(out1b, ref1b, atol=1e-5, rtol=1e-5), "mismatch (linear)"

    # 3) dim=-1 with C=32 (< 128): fused single-tile fallback.
    x2 = jax.random.normal(k2, (4, 8, 64), dtype=jnp.float32)
    out2 = jax.block_until_ready(gated_linear_unit(x2, dim=-1, nonlinear=True))
    ref2 = _glu_reference(x2, dim=-1, nonlinear=True)
    assert jnp.allclose(out2, ref2, atol=1e-5, rtol=1e-5), "mismatch (C=32)"

    # 4) non-minor split axis (dim=1): transpose-free (A, 2C, B) path.
    x3 = jax.random.normal(k3, (2, 16, 32), dtype=jnp.float32)
    out3 = jax.block_until_ready(gated_linear_unit(x3, dim=1, nonlinear=True))
    ref3 = _glu_reference(x3, dim=1, nonlinear=True)
    assert out3.shape == (2, 8, 32), out3.shape
    assert jnp.allclose(out3, ref3, atol=1e-5, rtol=1e-5), "mismatch (dim=1)"

    # 5) bf16 input: math stays in bf16.
    x4 = x1.astype(jnp.bfloat16)
    out4 = jax.block_until_ready(gated_linear_unit(x4, dim=-1, nonlinear=True))
    ref4 = _glu_reference(x4, dim=-1, nonlinear=True)
    assert jnp.allclose(out4.astype(jnp.float32), ref4.astype(jnp.float32),
                        atol=2e-2, rtol=2e-2), "mismatch (bf16)"

    print("KERNEL_OK")
</pallas_src>

<mosaic_0001>
module attributes {stable_mosaic.version = 11 : i64} {
  func.func @_glu_split_kernel(%arg0: i32, %arg1: memref<8x128xf32, #tpu.memory_space<vmem>>, %arg2: memref<8x128xf32, #tpu.memory_space<vmem>>, %arg3: memref<8x128xf32, #tpu.memory_space<vmem>>) attributes {dimension_semantics = [#tpu.dimension_semantics<parallel>], iteration_bounds = array<i64: 2>, scalar_prefetch = 0 : i64, scratch_operands = 0 : i64, tpu.core_type = #tpu.core_type<tc>, window_params = [{transform_indices = @transform_0, window_bounds = array<i64: 8, 128>}, {transform_indices = @transform_1, window_bounds = array<i64: 8, 128>}, {transform_indices = @transform_2, window_bounds = array<i64: 8, 128>}]} {
    %c0 = arith.constant 0 : index
    %c0_0 = arith.constant 0 : index
    %0 = vector.load %arg1[%c0, %c0_0] : memref<8x128xf32, #tpu.memory_space<vmem>>, vector<8x128xf32>
    %c0_1 = arith.constant 0 : index
    %c0_2 = arith.constant 0 : index
    %1 = vector.load %arg2[%c0_1, %c0_2] : memref<8x128xf32, #tpu.memory_space<vmem>>, vector<8x128xf32>
    %2 = math.tanh %0 : vector<8x128xf32>
    %3 = arith.negf %1 : vector<8x128xf32>
    %4 = math.exp %3 : vector<8x128xf32>
    %cst = arith.constant 1.000000e+00 : f32
    %5 = vector.broadcast %cst : f32 to vector<8x128xf32>
    %6 = arith.addf %5, %4 : vector<8x128xf32>
    %7 = arith.divf %5, %6 : vector<8x128xf32>
    %8 = arith.mulf %2, %7 : vector<8x128xf32>
    %c0_3 = arith.constant 0 : index
    %c0_4 = arith.constant 0 : index
    %9 = vector.load %arg3[%c0_3, %c0_4] : memref<8x128xf32, #tpu.memory_space<vmem>>, vector<8x128xf32>
    tpu.vector_store %arg3[%c0_3, %c0_4], %8 {strides = array<i32>} : memref<8x128xf32, #tpu.memory_space<vmem>>, vector<8x128xf32>,
    return
  }
  func.func @transform_0(%arg0: i32) -> (i32, i32) {
    %c0_i32 = arith.constant 0 : i32
    %c0_i32_0 = arith.constant 0 : i32
    return %arg0, %c0_i32 : i32, i32
  }
  func.func @transform_1(%arg0: i32) -> (i32, i32) {
    %c1_i32 = arith.constant 1 : i32
    %c0_i32 = arith.constant 0 : i32
    return %arg0, %c1_i32 : i32, i32
  }
  func.func @transform_2(%arg0: i32) -> (i32, i32) {
    %c0_i32 = arith.constant 0 : i32
    %c0_i32_0 = arith.constant 0 : i32
    return %arg0, %c0_i32 : i32, i32
  }
}

</mosaic_0001>

<llo_original>
// kernel: tpu_custom_call.1
$region0: #{tpu_custom_call.1}
  #allocation0 [shape = 'u32[]', space=smem, size = 0x4, offset = 0x4, fixed_abs, tag = 'smem constant byte address 0x4 - core index']
  #allocation1 [shape = 'u32[144,128]{1,0:T(1,128)}', space=vmem, size = 0x12000, scoped, tag = 'internal scratch']
  %s0 = inlined_call_operand.hbm [shape: f32[16,256], index: 0, kind: input, shape index: {}]
  %s1 = inlined_call_operand.hbm [shape: f32[16,256], index: 1, kind: input, shape index: {}]
  %s2 = inlined_call_operand.hbm [shape: f32[16,128], index: 2, kind: output, shape index: {}]
  %s3 = sld [smem:[#allocation0]]
  $region49: #{tpu_custom_call.1} parent=0
    _
  %s5 = ssub.s32 1, %s3
  %s6 = scalar_select 0, %s5, %s3
  $region1: #{tpu_custom_call.1} parent=0
    #allocation2 [shape = 'u8[8192]{0}', space=vmem, size = 0x2000, scoped, tag = 'input window, operand 0']
    #allocation3 [shape = 's32[2]{0}', space=sflag, size = 0x8, scoped, tag = 'scoped memory for tpu_custom_call.1']
    #allocation4 [shape = 's32[2]{0}', space=sflag, size = 0x8, scoped, tag = 'scoped memory for tpu_custom_call.1']
    #allocation5 [shape = 'u8[8192]{0}', space=vmem, size = 0x2000, scoped, tag = 'input window, operand 1']
    #allocation6 [shape = 's32[2]{0}', space=sflag, size = 0x8, scoped, tag = 'scoped memory for tpu_custom_call.1']
    #allocation7 [shape = 'u8[8192]{0}', space=vmem, size = 0x2000, scoped, tag = 'output window, operand 0']
    %7 = vsyncpa [#allocation3], 0
    %s8 = scalar_lea.sflag [#allocation3], 1
    %9 = vsyncpa %s8, 0
    %10 = vsyncpa [#allocation6], 0
    %s11 = scalar_lea.sflag [#allocation6], 1
    %12 = vsyncpa %s11, 0
    %13 = vsyncpa [#allocation4], 0
    %s14 = scalar_lea.sflag [#allocation4], 1
    %15 = vsyncpa %s14, 0
    loop: start=0, step=1, limit=4
    $region2: #{tpu_custom_call.1} parent=1 // loop_pre_header
      _
    $region3: #{tpu_custom_call.1} parent=1 // loop_header
      %s17 = sphi 0, %s21
      %p18 = scmp.ge.s32.totalorder %s17, 4
      %s27 = sphi 0, %s29
      %s30 = sphi 0, %s27
      %s31 = sphi 0, %s30
      %s47 = sphi 0, %s31
      %s53 = sphi 0, %s55
      %s56 = sphi 0, %s53
      %s57 = sphi 0, %s56
      %s73 = sphi 0, %s57
      %s79 = sphi 0, %s81
      %s82 = sphi 0, %s79
      %s83 = sphi 0, %s82
      %s99 = sphi 0, %s83
    $region4: #{tpu_custom_call.1} parent=1 // loop_header_branch
      %20 = sbr.rel (%p18) target = $region8
    $region5: #{tpu_custom_call.1} parent=1 // loop_body
      %s22 = ssub.s32 %s17, 1
      %s23 = ssub.s32 %s17, 2
      %s24 = sadd.s32 %s17, 1
      %s25 = ssub.s32 %s17, %s24
      %p26 = scmp.eq.s32.totalorder %s25, 0
      %s28 = sadd.s32 %s27, 1
      %s29 = scalar_select %p26, %s27, %s28
      %p32 = pneg %p26
      %p33 = scmp.eq.s32.totalorder %s17, 1
      %p34 = por %p32, %p33
      %p35 = scmp.ne.s32.totalorder %s27, %s30
      %p36 = scmp.eq.s32.totalorder %s17, 0
      %p37 = por %p35, %p36
      %p38 = scmp.ne.s32.totalorder %s27, %s30
      %p39 = scmp.eq.s32.totalorder %s22, 1
      %p40 = por %p38, %p39
      %p41 = scmp.ne.s32.totalorder %s30, %s31
      %p42 = scmp.eq.s32.totalorder %s22, 0
      %p43 = por %p41, %p42
      %p44 = scmp.ne.s32.totalorder %s30, %s31
      %p45 = scmp.eq.s32.totalorder %s23, 1
      %p46 = por %p44, %p45
      %p48 = scmp.ne.s32.totalorder %s31, %s47
      %p49 = scmp.eq.s32.totalorder %s23, 0
      %p50 = por %p48, %p49
      %s51 = ssub.s32 %s17, %s24
      %p52 = scmp.eq.s32.totalorder %s51, 0
      %s54 = sadd.s32 %s53, 1
      %s55 = scalar_select %p52, %s53, %s54
      %p58 = pneg %p52
      %p59 = scmp.eq.s32.totalorder %s17, 1
      %p60 = por %p58, %p59
      %p61 = scmp.ne.s32.totalorder %s53, %s56
      %p62 = scmp.eq.s32.totalorder %s17, 0
      %p63 = por %p61, %p62
      %p64 = scmp.ne.s32.totalorder %s53, %s56
      %p65 = scmp.eq.s32.totalorder %s22, 1
      %p66 = por %p64, %p65
      %p67 = scmp.ne.s32.totalorder %s56, %s57
      %p68 = scmp.eq.s32.totalorder %s22, 0
      %p69 = por %p67, %p68
      %p70 = scmp.ne.s32.totalorder %s56, %s57
      %p71 = scmp.eq.s32.totalorder %s23, 1
      %p72 = por %p70, %p71
      %p74 = scmp.ne.s32.totalorder %s57, %s73
      %p75 = scmp.eq.s32.totalorder %s23, 0
      %p76 = por %p74, %p75
      %s77 = ssub.s32 %s17, %s24
      %p78 = scmp.eq.s32.totalorder %s77, 0
      %s80 = sadd.s32 %s79, 1
      %s81 = scalar_select %p78, %s79, %s80
      %p84 = pneg %p78
      %p85 = scmp.eq.s32.totalorder %s17, 1
      %p86 = por %p84, %p85
      %p87 = scmp.ne.s32.totalorder %s79, %s82
      %p88 = scmp.eq.s32.totalorder %s17, 0
      %p89 = por %p87, %p88
      %p90 = scmp.ne.s32.totalorder %s79, %s82
      %p91 = scmp.eq.s32.totalorder %s22, 1
      %p92 = por %p90, %p91
      %p93 = scmp.ne.s32.totalorder %s82, %s83
      %p94 = scmp.eq.s32.totalorder %s22, 0
      %p95 = por %p93, %p94
      %p96 = scmp.ne.s32.totalorder %s82, %s83
      %p97 = scmp.eq.s32.totalorder %s23, 1
      %p98 = por %p96, %p97
      %p100 = scmp.ne.s32.totalorder %s83, %s99
      %p101 = scmp.eq.s32.totalorder %s23, 0
      %p102 = por %p100, %p101
      %p103 = scmp.le.s32.totalorder 1, %s17
      %p104 = scmp.lt.s32.totalorder %s17, 3
      %p105 = pnand %p103, %p104
      %p106 = pneg %p105
      // Predicated region
      $region9: #{tpu_custom_call.1} parent=5 // pred_check
        _
      $region10: #{tpu_custom_call.1} parent=5 // pred_check_branch
        %108 = sbr.rel (%p105) target = $region12
      $region11: #{tpu_custom_call.1} parent=5 // pred_region
        %s109 = ssub.s32 %s17, 1
      $region12: #{tpu_custom_call.1} parent=5 // pred_fallthru
        _
      %p110 = scmp.lt.s32.totalorder %s17, 2
      // Predicated region
      $region13: #{tpu_custom_call.1} parent=5 // pred_check
        %p111 = pneg %p110
      $region14: #{tpu_custom_call.1} parent=5 // pred_check_branch
        %113 = sbr.rel (%p111) target = $region16
      $region15: #{tpu_custom_call.1} parent=5 // pred_region
        // Predicated region
        $region17: #{tpu_custom_call.1} parent=15 // pred_check
          %p114 = pneg %p37
        $region18: #{tpu_custom_call.1} parent=15 // pred_check_branch
          %116 = sbr.rel (%p114) target = $region20
        $region19: #{tpu_custom_call.1} parent=15 // pred_region
          %s117 = sand.u32 %s27, 1
          %s118 = scalar_lea.sflag [#allocation3], %s117
          %s119 = sand.u32 %s27, 1
          %s120 = smul.addr %s119, 8
          %s121 = scalar_lea.vmem [#allocation2], %s120
          %s123 = ssub.s32 128, 128
          %124 = vsyncadd %s118, %s123
          %s125 = smul.addr %s17, 2
          %s126 = smul.addr %s125, 128
          %s127 = scalar_lea.hbm %s0, %s126
          %s129 = sshll.u32 %s121, 4
          %s130 = int_to_ptr.vmem [resolvable:$true] %s129
          %132 = dma.hbm_to_vmem [thread:$0]  %s127, 128, %s130, %s118
        $region20: #{tpu_custom_call.1} parent=15 // pred_fallthru
          _
        // Predicated region
        $region21: #{tpu_custom_call.1} parent=15 // pred_check
          %p133 = pneg %p63
        $region22: #{tpu_custom_call.1} parent=15 // pred_check_branch
          %135 = sbr.rel (%p133) target = $region24
        $region23: #{tpu_custom_call.1} parent=15 // pred_region
          %s136 = sand.u32 %s53, 1
          %s137 = scalar_lea.sflag [#allocation6], %s136
          %s138 = sand.u32 %s53, 1
          %s139 = smul.addr %s138, 8
          %s140 = scalar_lea.vmem [#allocation5], %s139
          %s142 = ssub.s32 128, 128
          %143 = vsyncadd %s137, %s142
          %s144 = smul.addr %s17, 2
          %s145 = sadd.s32 1, %s144
          %s146 = smul.addr %s145, 128
          %s147 = scalar_lea.hbm %s1, %s146
          %s149 = sshll.u32 %s140, 4
          %s150 = int_to_ptr.vmem [resolvable:$true] %s149
          %152 = dma.hbm_to_vmem [thread:$0]  %s147, 128, %s150, %s137
        $region24: #{tpu_custom_call.1} parent=15 // pred_fallthru
          _
      $region16: #{tpu_custom_call.1} parent=5 // pred_fallthru
        _
      %p153 = scmp.le.s32.totalorder 1, %s17
      %p154 = scmp.lt.s32.totalorder %s17, 3
      %p155 = pnand %p153, %p154
      %p156 = pneg %p155
      // Predicated region
      $region25: #{tpu_custom_call.1} parent=5 // pred_check
        _
      $region26: #{tpu_custom_call.1} parent=5 // pred_check_branch
        %158 = sbr.rel (%p155) target = $region28
      $region27: #{tpu_custom_call.1} parent=5 // pred_region
        %s159 = ssub.s32 %s17, 1
        %s160 = sand.u32 %s30, 1
        %s161 = scalar_lea.sflag [#allocation3], %s160
        %s162 = sand.u32 %s30, 1
        %s163 = smul.addr %s162, 8
        %s164 = scalar_lea.vmem [#allocation2], %s163
        // Predicated region
        $region29: #{tpu_custom_call.1} parent=27 // pred_check
          %p165 = pneg %p43
        $region30: #{tpu_custom_call.1} parent=27 // pred_check_branch
          %167 = sbr.rel (%p165) target = $region32
        $region31: #{tpu_custom_call.1} parent=27 // pred_region
          %168 = dma.done %s161, 128
        $region32: #{tpu_custom_call.1} parent=27 // pred_fallthru
          _
        %s169 = sand.u32 %s56, 1
        %s170 = scalar_lea.sflag [#allocation6], %s169
        %s171 = sand.u32 %s56, 1
        %s172 = smul.addr %s171, 8
        %s173 = scalar_lea.vmem [#allocation5], %s172
        // Predicated region
        $region33: #{tpu_custom_call.1} parent=27 // pred_check
          %p174 = pneg %p69
        $region34: #{tpu_custom_call.1} parent=27 // pred_check_branch
          %176 = sbr.rel (%p174) target = $region36
        $region35: #{tpu_custom_call.1} parent=27 // pred_region
          %177 = dma.done %s170, 128
        $region36: #{tpu_custom_call.1} parent=27 // pred_fallthru
          _
        %s178 = sand.u32 %s30, 1
        %s179 = scalar_lea.sflag [#allocation3], %s178
        %s180 = sand.u32 %s30, 1
        %s181 = smul.addr %s180, 8
        %s182 = scalar_lea.vmem [#allocation2], %s181
        %p183 = pneg %p43
        %p184 = pneg %p40
        %s185 = sand.u32 %s56, 1
        %s186 = scalar_lea.sflag [#allocation6], %s185
        %s187 = sand.u32 %s56, 1
        %s188 = smul.addr %s187, 8
        %s189 = scalar_lea.vmem [#allocation5], %s188
        %p190 = pneg %p69
        %p191 = pneg %p66
        %p192 = pneg %p95
        %p193 = pneg %p92
        %s194 = sand.u32 %s82, 1
        %s195 = scalar_lea.sflag [#allocation4], %s194
        %s196 = sand.u32 %s82, 1
        %s197 = smul.addr %s196, 8
        %s198 = scalar_lea.vmem [#allocation7], %s197
        %v199 = vld [vmem:[%s164] sm:$0xff]
        %v200 = vld [vmem:[%s173] sm:$0xff]
        %v201 = vtanh.pop %v199
        %v202 = vxor.u32 %v200, 2147483648
        %v203 = vmul.f32 %v202, 1.442695
        %v204 = vpow.pop %v203
        %v205 = vadd.f32 %v204, 1.0
        %v206 = vrcp.pop %v205
        %v207 = vmul.f32 1.0, %v206
        %v208 = vmul.f32 %v201, %v207
        %209 = vst [vmem:[%s198] sm:$0xff] %v208
        %s210 = sand.u32 %s82, 1
        %s211 = scalar_lea.sflag [#allocation4], %s210
        %s212 = sand.u32 %s82, 1
        %s213 = smul.addr %s212, 8
        %s214 = scalar_lea.vmem [#allocation7], %s213
        // Predicated region
        $region37: #{tpu_custom_call.1} parent=27 // pred_check
          %p215 = pneg %p92
        $region38: #{tpu_custom_call.1} parent=27 // pred_check_branch
          %217 = sbr.rel (%p215) target = $region40
        $region39: #{tpu_custom_call.1} parent=27 // pred_region
          %s219 = ssub.s32 128, 128
          %220 = vsyncadd %s211, %s219
          %s221 = smul.addr %s22, 128
          %s222 = scalar_lea.hbm %s2, %s221
          %s224 = sshll.u32 %s214, 4
          %s225 = int_to_ptr.vmem [resolvable:$true] %s224
          %227 = dma.vmem_to_hbm [thread:$0]  %s225, 128, %s222, %s211
        $region40: #{tpu_custom_call.1} parent=27 // pred_fallthru
          _
      $region28: #{tpu_custom_call.1} parent=5 // pred_fallthru
        _
      %p228 = scmp.le.s32.totalorder 2, %s17
      // Predicated region
      $region41: #{tpu_custom_call.1} parent=5 // pred_check
        %p229 = pneg %p228
      $region42: #{tpu_custom_call.1} parent=5 // pred_check_branch
        %231 = sbr.rel (%p229) target = $region44
      $region43: #{tpu_custom_call.1} parent=5 // pred_region
        %s232 = ssub.s32 %s17, 2
        // Predicated region
        $region45: #{tpu_custom_call.1} parent=43 // pred_check
          %p233 = pneg %p98
        $region46: #{tpu_custom_call.1} parent=43 // pred_check_branch
          %235 = sbr.rel (%p233) target = $region48
        $region47: #{tpu_custom_call.1} parent=43 // pred_region
          %s236 = sand.u32 %s83, 1
          %s237 = scalar_lea.sflag [#allocation4], %s236
          %s238 = sand.u32 %s83, 1
          %s239 = smul.addr %s238, 8
          %s240 = scalar_lea.vmem [#allocation7], %s239
          %241 = dma.done %s237, 128
        $region48: #{tpu_custom_call.1} parent=43 // pred_fallthru
          _
      $region44: #{tpu_custom_call.1} parent=5 // pred_fallthru
        _
    $region6: #{tpu_custom_call.1} parent=1 // loop_footer
      %s21 = sadd.s32 1, %s17
    $region7: #{tpu_custom_call.1} parent=1 // loop_footer_branch
      %16 = sbr.rel target = $region3
    $region8: #{tpu_custom_call.1} parent=1 // loop_exit
      _
    %242 = vsyncpa [#allocation3], 1
    %s243 = scalar_lea.sflag [#allocation3], 1
    %244 = vsyncpa %s243, 1
    %245 = vsyncpa [#allocation6], 1
    %s246 = scalar_lea.sflag [#allocation6], 1
    %247 = vsyncpa %s246, 1
    %248 = vsyncpa [#allocation4], 1
    %s249 = scalar_lea.sflag [#allocation4], 1
    %250 = vsyncpa %s249, 1

</llo_original>
